<compile_context>
chip_gen: v5e
topology: v5e:2x2
jax: 0.10.0
libtpu: 0.0.40
codegen_flags: <defaults>
</compile_context>

<pallas_src>
import jax
import jax.numpy as jnp
from jax import lax
from jax.experimental import pallas as pl
from jax.experimental.pallas import tpu as pltpu

BN_EPS = 1e-5


def _round_up(a, b):
    return (a + b - 1) // b * b


def _chip_kind():
    try:
        return jax.devices()[0].device_kind.lower()
    except Exception:
        return ""


# ---------------------------------------------------------------------------
# Pass 1: tiled matmul (conv as im2col GEMM) + per-tile BN partial statistics.
# ---------------------------------------------------------------------------
def _make_conv_stats_kernel(tk, w_resident):
    def kernel(p_ref, w_ref, y_ref, sum_ref, ssq_ref, acc_ref):
        # p_ref:   (TM, TK)                          bf16 im2col patches tile
        # w_ref:   (KC_PAD, C_PAD) [resident] or (TK, C_PAD)   bf16 weights
        # y_ref:   (TM, C_PAD)                       bf16 conv output tile
        # sum_ref: (8,  C_PAD)                       f32 partial channel sums
        # ssq_ref: (8,  C_PAD)                       f32 partial channel sumsq
        # acc_ref: (TM, C_PAD)                       f32 VMEM accumulator
        kk = pl.program_id(1)

        @pl.when(kk == 0)
        def _init():
            acc_ref[...] = jnp.zeros_like(acc_ref)

        if w_resident:
            w = w_ref[pl.ds(pl.multiple_of(kk * tk, tk), tk), :]
        else:
            w = w_ref[...]
        acc_ref[...] += jnp.dot(p_ref[...], w,
                                preferred_element_type=jnp.float32)

        @pl.when(kk == pl.num_programs(1) - 1)
        def _finish():
            # Single accumulator load feeds the y store and both reductions
            # (keeps the epilogue light for v5e's single vector-store slot).
            y = acc_ref[...]
            y_ref[...] = y.astype(y_ref.dtype)
            s = jnp.sum(y, axis=0, keepdims=True)        # (1, C_PAD), XLU
            q = jnp.sum(y * y, axis=0, keepdims=True)
            sum_ref[...] = jnp.broadcast_to(s, sum_ref.shape)
            ssq_ref[...] = jnp.broadcast_to(q, ssq_ref.shape)

    return kernel


# ---------------------------------------------------------------------------
# Pass 2: fused BatchNorm affine (single FMA) + ReLU, written directly in the
# NCHW output layout (lane-dense tm-wide last dim, in-kernel XLU transpose).
# ---------------------------------------------------------------------------
def _bn_relu_nchw_kernel(y_ref, scale_ref, shift_ref, o_ref):
    # y_ref:     (TM, C_PAD)  bf16 conv output tile (rows = flat spatial)
    # scale_ref: (1, C_PAD)   f32 folded gamma * rsqrt(var + eps)
    # shift_ref: (1, C_PAD)   f32 folded beta - mean * scale
    # o_ref:     (1, COUT, TM) out_dtype, NCHW-layout tile
    cout = o_ref.shape[1]
    y = y_ref[...].astype(jnp.float32)
    z = jnp.maximum(y * scale_ref[...] + shift_ref[...], 0.0)
    zt = jnp.transpose(z, (1, 0))                       # (C_PAD, TM) via XLU
    o_ref[0] = zt[:cout, :].astype(o_ref.dtype)


def conv2d_bn_relu(x_nchw, weight, bias, gamma, beta, *, k, s, p,
                   out_dtype=jnp.bfloat16):
    """Forward of the PyTorch Conv2d module (conv + BatchNorm(train) + ReLU).

    x_nchw: [N, Cin, H, W]; weight: [Cout, Cin, k, k]; bias/gamma/beta: [Cout].
    `bias` is accepted for interface parity but is mathematically cancelled by
    the training-mode BatchNorm mean subtraction, so it is not applied.
    """
    del bias  # exactly cancelled by training-mode BN mean subtraction
    n, cin, h, w = x_nchw.shape
    cout = weight.shape[0]
    oh = (h + 2 * p - k) // s + 1
    ow = (w + 2 * p - k) // s + 1
    hw = oh * ow
    rows = n * hw
    kc = k * k * cin

    kind = _chip_kind()
    is_v5e = ("v5 lite" in kind) or ("v5e" in kind) or ("v5litepod" in kind)
    is_v6e = "v6" in kind

    # ------------------------------ tile plan ------------------------------
    # Cout (GEMM N dim): 256-aligned for v6e/v7x's 2x256x256 MXU when it
    # matters; 128 on v5e (4x128x128 MXU) or when cout <= 128 (padding waste).
    cout_align = 256 if (not is_v5e and cout > 128) else 128
    cout_pad = _round_up(cout, cout_align)

    # K dim (= k*k*Cin): keep K tiles >= 256 by padding kc up when the extra
    # zero-FLOP work is small (<= 12.5%); single K step when kc_pad <= 512.
    kc_128 = _round_up(kc, 128)
    if kc_128 <= 512:
        kc_pad, tk = kc_128, kc_128
    else:
        kc_pad, tk = kc_128, 128
        for cand in (512, 256):
            padded = _round_up(kc, cand)
            if padded - kc_128 <= kc_128 // 8:
                kc_pad, tk = padded, cand
                break
    k_tiles = kc_pad // tk

    # Row tile: target 512, multiple of 128 (lane-dense pass-2 output), shrink
    # only to bound per-image row-padding waste; keep >= 2 M tiles for v7x.
    tm = 128
    for cand in (512, 384, 256, 128):
        if _round_up(hw, cand) - hw <= max(hw // 8, 64):
            tm = cand
            break
    hw_pad = _round_up(hw, tm)
    if n * (hw_pad // tm) < 2 and hw > 128:
        tm = 128                      # give both v7x TensorCores work
        hw_pad = _round_up(hw, tm)
    hw_tiles = hw_pad // tm
    m_tiles = n * hw_tiles

    # Weight residency: keep the whole (kc_pad, cout_pad) bf16 weight in VMEM
    # (fetched once) unless it would crowd the per-TC VMEM budget.
    w_resident = 2 * kc_pad * cout_pad * 2 <= 24 * 1024 * 1024

    # Per-chip scoped VMEM budget (v5e/v6e: 128 MiB physical; unknown/v7x: be
    # conservative against v7x's 64 MiB per TensorCore).
    vmem_limit = (64 if (is_v5e or is_v6e) else 48) * 1024 * 1024

    # --- glue: NCHW -> NHWC (bf16), spatial pad, im2col, per-image row pad ---
    # TODO(synk): build these k*k patches inside pass 1 (halo DMA of the padded
    # NHWC input) to remove the k^2 HBM read amplification of the im2col.
    x = jnp.transpose(x_nchw.astype(jnp.bfloat16), (0, 2, 3, 1))      # NHWC
    xp = jnp.pad(x, ((0, 0), (p, p), (p, p), (0, 0)))
    cols = []
    for dy in range(k):
        for dx in range(k):
            cols.append(xp[:, dy:dy + (oh - 1) * s + 1:s,
                             dx:dx + (ow - 1) * s + 1:s, :])
    patches = jnp.concatenate(cols, axis=-1).reshape(n, hw, kc)       # bf16
    patches = jnp.pad(patches, ((0, 0), (0, hw_pad - hw), (0, kc_pad - kc)))
    patches = patches.reshape(n * hw_pad, kc_pad)

    # weight [Cout, Cin, kh, kw] -> [(kh, kw, Cin), Cout], padded, bf16
    w_mat = jnp.transpose(weight, (2, 3, 1, 0)).reshape(kc, cout)
    w_mat = jnp.pad(w_mat, ((0, kc_pad - kc), (0, cout_pad - cout)))
    w_mat = w_mat.astype(jnp.bfloat16)

    if w_resident:
        w_spec = pl.BlockSpec((kc_pad, cout_pad), lambda i, kk: (0, 0))
    else:
        w_spec = pl.BlockSpec((tk, cout_pad), lambda i, kk: (kk, 0))

    # ---------------- pass 1: conv matmul + partial BN stats ----------------
    y_bf16, psum, pssq = pl.pallas_call(
        _make_conv_stats_kernel(tk, w_resident),
        out_shape=(
            jax.ShapeDtypeStruct((n * hw_pad, cout_pad), jnp.bfloat16),
            jax.ShapeDtypeStruct((m_tiles * 8, cout_pad), jnp.float32),
            jax.ShapeDtypeStruct((m_tiles * 8, cout_pad), jnp.float32),
        ),
        grid_spec=pltpu.PrefetchScalarGridSpec(
            num_scalar_prefetch=0,
            grid=(m_tiles, k_tiles),
            in_specs=[
                pl.BlockSpec((tm, tk), lambda i, kk: (i, kk)),
                w_spec,
            ],
            out_specs=[
                pl.BlockSpec((tm, cout_pad), lambda i, kk: (i, 0)),
                pl.BlockSpec((8, cout_pad), lambda i, kk: (i, 0)),
                pl.BlockSpec((8, cout_pad), lambda i, kk: (i, 0)),
            ],
            scratch_shapes=[pltpu.VMEM((tm, cout_pad), jnp.float32)],
        ),
        compiler_params=pltpu.CompilerParams(
            dimension_semantics=("parallel", "arbitrary"),
            vmem_limit_bytes=vmem_limit),
    )(patches, w_mat)

    # -------- tiny JAX reduce: combine per-tile partials, fold gamma/beta ----
    # (E[x^2]-E[x]^2 in f32, clamped at 0; per-tile partials would also allow a
    #  Welford-style pairwise combine if tighter tolerances were ever needed.)
    psum = psum.reshape(m_tiles, 8, cout_pad)[:, 0, :].sum(axis=0)
    pssq = pssq.reshape(m_tiles, 8, cout_pad)[:, 0, :].sum(axis=0)
    mean = psum / rows
    var = jnp.maximum(pssq / rows - mean * mean, 0.0)   # biased variance
    gamma_p = jnp.pad(gamma.astype(jnp.float32), (0, cout_pad - cout))
    beta_p = jnp.pad(beta.astype(jnp.float32), (0, cout_pad - cout))
    scale = gamma_p * lax.rsqrt(var + BN_EPS)
    shift = beta_p - mean * scale
    scale2 = scale.reshape(1, cout_pad)
    shift2 = shift.reshape(1, cout_pad)

    # -------- pass 2: BN affine + ReLU, written directly as NCHW ------------
    out_p = pl.pallas_call(
        _bn_relu_nchw_kernel,
        out_shape=jax.ShapeDtypeStruct((n, cout, hw_pad), out_dtype),
        grid_spec=pltpu.PrefetchScalarGridSpec(
            num_scalar_prefetch=0,
            grid=(n, hw_tiles),
            in_specs=[
                pl.BlockSpec((tm, cout_pad),
                             lambda nn, j: (nn * hw_tiles + j, 0)),
                pl.BlockSpec((1, cout_pad), lambda nn, j: (0, 0)),
                pl.BlockSpec((1, cout_pad), lambda nn, j: (0, 0)),
            ],
            out_specs=pl.BlockSpec((1, cout, tm), lambda nn, j: (nn, 0, j)),
        ),
        compiler_params=pltpu.CompilerParams(
            dimension_semantics=("parallel", "parallel"),
            vmem_limit_bytes=vmem_limit),
    )(y_bf16, scale2, shift2)

    out = out_p if hw_pad == hw else out_p[:, :, :hw]
    return out.reshape(n, cout, oh, ow)       # already NCHW (module contract)


def _reference(x_nchw, weight, gamma, beta, *, k, s, p):
    # bf16-rounded operands to match the MXU operand precision of the kernel.
    xr = x_nchw.astype(jnp.bfloat16).astype(jnp.float32)
    wr = weight.astype(jnp.bfloat16).astype(jnp.float32)
    y = lax.conv_general_dilated(
        xr, wr, window_strides=(s, s), padding=[(p, p), (p, p)],
        dimension_numbers=("NCHW", "OIHW", "NCHW"))
    # (conv bias omitted: cancelled exactly by training-mode BN)
    mean = jnp.mean(y, axis=(0, 2, 3), keepdims=True)
    var = jnp.mean((y - mean) ** 2, axis=(0, 2, 3), keepdims=True)
    y = (y - mean) * lax.rsqrt(var + BN_EPS)
    y = y * gamma.reshape(1, -1, 1, 1) + beta.reshape(1, -1, 1, 1)
    return jnp.maximum(y, 0.0)


if __name__ == "__main__":
    # Small shapes: N=2, Cin=4, H=W=16, Cout=8, k=3, s=1, p=1
    N, CIN, H, W = 2, 4, 16, 16
    COUT, K, S, P = 8, 3, 1, 1

    key = jax.random.PRNGKey(0)
    kx, kw, kb, kg, kbe = jax.random.split(key, 5)
    x = jax.random.normal(kx, (N, CIN, H, W), dtype=jnp.float32)
    weight = jax.random.normal(kw, (COUT, CIN, K, K), dtype=jnp.float32) * 0.1
    bias = jax.random.normal(kb, (COUT,), dtype=jnp.float32) * 0.1
    gamma = 1.0 + 0.1 * jax.random.normal(kg, (COUT,), dtype=jnp.float32)
    beta = 0.1 * jax.random.normal(kbe, (COUT,), dtype=jnp.float32)

    out = conv2d_bn_relu(x, weight, bias, gamma, beta, k=K, s=S, p=P)
    out = jax.block_until_ready(out)

    ref = _reference(x, weight, gamma, beta, k=K, s=S, p=P)
    assert out.shape == (N, COUT, H, W), out.shape
    err = float(jnp.max(jnp.abs(out.astype(jnp.float32) - ref)))
    assert jnp.allclose(out.astype(jnp.float32), ref, atol=2e-2, rtol=2e-2), err

    print("KERNEL_OK")
</pallas_src>

<mosaic_0001>
module attributes {stable_mosaic.version = 11 : i64} {
  func.func @kernel(%arg0: i32, %arg1: i32, %arg2: memref<256x128xbf16, #tpu.memory_space<vmem>>, %arg3: memref<128x128xbf16, #tpu.memory_space<vmem>>, %arg4: memref<256x128xbf16, #tpu.memory_space<vmem>>, %arg5: memref<8x128xf32, #tpu.memory_space<vmem>>, %arg6: memref<8x128xf32, #tpu.memory_space<vmem>>, %arg7: memref<256x128xf32, #tpu.memory_space<vmem>>) attributes {dimension_semantics = [#tpu.dimension_semantics<parallel>, #tpu.dimension_semantics<arbitrary>], iteration_bounds = array<i64: 2, 1>, scalar_prefetch = 0 : i64, scratch_operands = 1 : i64, tpu.core_type = #tpu.core_type<tc>, window_params = [{transform_indices = @transform_0, window_bounds = array<i64: 256, 128>}, {pipeline_mode = #tpu.pipeline_mode<synchronous>, transform_indices = @transform_1, window_bounds = array<i64: 128, 128>}, {transform_indices = @transform_2, window_bounds = array<i64: 256, 128>}, {transform_indices = @transform_3, window_bounds = array<i64: 8, 128>}, {transform_indices = @transform_4, window_bounds = array<i64: 8, 128>}]} {
    %c0_i32 = arith.constant 0 : i32
    %0 = arith.cmpi eq, %arg1, %c0_i32 : i32
    %1 = arith.extui %0 : i1 to i32
    %c0_i32_0 = arith.constant 0 : i32
    %2 = arith.cmpi ne, %1, %c0_i32_0 : i32
    scf.if %2 {
      %cst_9 = arith.constant 0.000000e+00 : f32
      %15 = vector.broadcast %cst_9 : f32 to vector<256x128xf32>
      %c0_10 = arith.constant 0 : index
      %c0_11 = arith.constant 0 : index
      %16 = vector.load %arg7[%c0_10, %c0_11] : memref<256x128xf32, #tpu.memory_space<vmem>>, vector<256x128xf32>
      tpu.vector_store %arg7[%c0_10, %c0_11], %15 {strides = array<i32>} : memref<256x128xf32, #tpu.memory_space<vmem>>, vector<256x128xf32>,
    } else {
    }
    %c128_i32 = arith.constant 128 : i32
    %3 = arith.muli %arg1, %c128_i32 : i32
    %4 = tpu.assume_multiple %3, 128 : i32
    %5 = arith.index_cast %4 : i32 to index
    %c0 = arith.constant 0 : index
    %6 = vector.load %arg3[%5, %c0] : memref<128x128xbf16, #tpu.memory_space<vmem>>, vector<128x128xbf16>
    %c0_1 = arith.constant 0 : index
    %c0_2 = arith.constant 0 : index
    %7 = vector.load %arg7[%c0_1, %c0_2] : memref<256x128xf32, #tpu.memory_space<vmem>>, vector<256x128xf32>
    %c0_3 = arith.constant 0 : index
    %c0_4 = arith.constant 0 : index
    %8 = vector.load %arg2[%c0_3, %c0_4] : memref<256x128xbf16, #tpu.memory_space<vmem>>, vector<256x128xbf16>
    %cst = arith.constant dense<0.000000e+00> : vector<256x128xf32>
    %9 = tpu.matmul %8, %6, %cst {dimension_numbers = #tpu.dot_dimension_numbers<[1], [0], [0], [1], [0, 0, 1, 1], [], []>} : vector<256x128xbf16>, vector<128x128xbf16>, vector<256x128xf32> -> vector<256x128xf32>
    %10 = arith.addf %7, %9 : vector<256x128xf32>
    %c0_5 = arith.constant 0 : index
    %c0_6 = arith.constant 0 : index
    %11 = vector.load %arg7[%c0_5, %c0_6] : memref<256x128xf32, #tpu.memory_space<vmem>>, vector<256x128xf32>
    tpu.vector_store %arg7[%c0_5, %c0_6], %10 {strides = array<i32>} : memref<256x128xf32, #tpu.memory_space<vmem>>, vector<256x128xf32>,
    %c0_i32_7 = arith.constant 0 : i32
    %12 = arith.cmpi eq, %arg1, %c0_i32_7 : i32
    %13 = arith.extui %12 : i1 to i32
    %c0_i32_8 = arith.constant 0 : i32
    %14 = arith.cmpi ne, %13, %c0_i32_8 : i32
    scf.if %14 {
      %c0_9 = arith.constant 0 : index
      %c0_10 = arith.constant 0 : index
      %15 = vector.load %arg7[%c0_9, %c0_10] : memref<256x128xf32, #tpu.memory_space<vmem>>, vector<256x128xf32>
      %16 = arith.truncf %15 : vector<256x128xf32> to vector<256x128xbf16>
      %c0_11 = arith.constant 0 : index
      %c0_12 = arith.constant 0 : index
      %17 = vector.load %arg4[%c0_11, %c0_12] : memref<256x128xbf16, #tpu.memory_space<vmem>>, vector<256x128xbf16>
      tpu.vector_store %arg4[%c0_11, %c0_12], %16 {strides = array<i32>} : memref<256x128xbf16, #tpu.memory_space<vmem>>, vector<256x128xbf16>,
      %cst_13 = arith.constant dense<0.000000e+00> : vector<128xf32>
      %18 = vector.multi_reduction <add>, %15, %cst_13 [0] : vector<256x128xf32> to vector<128xf32>
      %19 = vector.shape_cast %18 : vector<128xf32> to vector<1x128xf32>
      %20 = arith.mulf %15, %15 : vector<256x128xf32>
      %cst_14 = arith.constant dense<0.000000e+00> : vector<128xf32>
      %21 = vector.multi_reduction <add>, %20, %cst_14 [0] : vector<256x128xf32> to vector<128xf32>
      %22 = vector.shape_cast %21 : vector<128xf32> to vector<1x128xf32>
      %23 = vector.shape_cast %19 : vector<1x128xf32> to vector<1x128xf32>
      %24 = vector.broadcast %23 : vector<1x128xf32> to vector<8x128xf32>
      %c0_15 = arith.constant 0 : index
      %c0_16 = arith.constant 0 : index
      %25 = vector.load %arg5[%c0_15, %c0_16] : memref<8x128xf32, #tpu.memory_space<vmem>>, vector<8x128xf32>
      tpu.vector_store %arg5[%c0_15, %c0_16], %24 {strides = array<i32>} : memref<8x128xf32, #tpu.memory_space<vmem>>, vector<8x128xf32>,
      %26 = vector.shape_cast %22 : vector<1x128xf32> to vector<1x128xf32>
      %27 = vector.broadcast %26 : vector<1x128xf32> to vector<8x128xf32>
      %c0_17 = arith.constant 0 : index
      %c0_18 = arith.constant 0 : index
      %28 = vector.load %arg6[%c0_17, %c0_18] : memref<8x128xf32, #tpu.memory_space<vmem>>, vector<8x128xf32>
      tpu.vector_store %arg6[%c0_17, %c0_18], %27 {strides = array<i32>} : memref<8x128xf32, #tpu.memory_space<vmem>>, vector<8x128xf32>,
    } else {
    }
    return
  }
  func.func @transform_0(%arg0: i32, %arg1: i32) -> (i32, i32) {
    %c0_i32 = arith.constant 0 : i32
    return %arg0, %arg1 : i32, i32
  }
  func.func @transform_1(%arg0: i32, %arg1: i32) -> (i32, i32) {
    %c0_i32 = arith.constant 0 : i32
    %c0_i32_0 = arith.constant 0 : i32
    %c0_i32_1 = arith.constant 0 : i32
    return %c0_i32, %c0_i32_0 : i32, i32
  }
  func.func @transform_2(%arg0: i32, %arg1: i32) -> (i32, i32) {
    %c0_i32 = arith.constant 0 : i32
    %c0_i32_0 = arith.constant 0 : i32
    return %arg0, %c0_i32 : i32, i32
  }
  func.func @transform_3(%arg0: i32, %arg1: i32) -> (i32, i32) {
    %c0_i32 = arith.constant 0 : i32
    %c0_i32_0 = arith.constant 0 : i32
    return %arg0, %c0_i32 : i32, i32
  }
  func.func @transform_4(%arg0: i32, %arg1: i32) -> (i32, i32) {
    %c0_i32 = arith.constant 0 : i32
    %c0_i32_0 = arith.constant 0 : i32
    return %arg0, %c0_i32 : i32, i32
  }
}

</mosaic_0001>

<llo_original>
// kernel: tpu_custom_call.1
$region0: #{tpu_custom_call.1}
  #allocation0 [shape = 'u32[]', space=smem, size = 0x4, offset = 0x4, fixed_abs, tag = 'smem constant byte address 0x4 - core index']
  #allocation1 [shape = 'u32[72,128]{1,0:T(1,128)}', space=vmem, size = 0x9000, scoped, tag = 'internal scratch']
  #allocation2 [shape = 'f32[256,128]{1,0:T(8,128)}', space=vmem, size = 0x20000, scoped, tag = 'scratch operand']
  %s0 = inlined_call_operand.hbm [shape: bf16[512,128], index: 0, kind: input, shape index: {}]
  %s1 = inlined_call_operand.hbm [shape: bf16[128,128], index: 1, kind: input, shape index: {}]
  %s2 = inlined_call_operand.hbm [shape: bf16[512,128], index: 2, kind: output, shape index: {0}]
  %s3 = inlined_call_operand.hbm [shape: f32[16,128], index: 3, kind: output, shape index: {1}]
  %s4 = inlined_call_operand.hbm [shape: f32[16,128], index: 4, kind: output, shape index: {2}]
  %5 = xla_tuple %s2, %s3, %s4
  %s6 = sld [smem:[#allocation0]]
  $region73: #{tpu_custom_call.1} parent=0
    _
  %s8 = ssub.s32 1, %s6
  %s9 = scalar_select 0, %s8, %s6
  $region1: #{tpu_custom_call.1} parent=0
    #allocation3 [shape = 'u8[131072]{0}', space=vmem, size = 0x20000, scoped, tag = 'input window, operand 0']
    #allocation4 [shape = 's32[2]{0}', space=sflag, size = 0x8, scoped, tag = 'scoped memory for tpu_custom_call.1']
    #allocation5 [shape = 's32[2]{0}', space=sflag, size = 0x8, scoped, tag = 'scoped memory for tpu_custom_call.1']
    #allocation6 [shape = 'u8[32768]{0}', space=vmem, size = 0x8000, scoped, tag = 'input window, operand 1, single buffered']
    #allocation7 [shape = 's32[1]{0}', space=sflag, size = 0x4, scoped, tag = 'scoped memory for tpu_custom_call.1']
    #allocation8 [shape = 'u8[131072]{0}', space=vmem, size = 0x20000, scoped, tag = 'output window, operand 0']
    #allocation9 [shape = 'u8[8192]{0}', space=vmem, size = 0x2000, scoped, tag = 'output window, operand 1']
    #allocation10 [shape = 's32[2]{0}', space=sflag, size = 0x8, scoped, tag = 'scoped memory for tpu_custom_call.1']
    #allocation11 [shape = 'u8[8192]{0}', space=vmem, size = 0x2000, scoped, tag = 'output window, operand 2']
    %10 = vsyncpa [#allocation4], 0
    %s11 = scalar_lea.sflag [#allocation4], 1
    %12 = vsyncpa %s11, 0
    %13 = vsyncpa [#allocation7], 0
    %14 = vsyncpa [#allocation5], 0
    %s15 = scalar_lea.sflag [#allocation5], 1
    %16 = vsyncpa %s15, 0
    %17 = vsyncpa [#allocation10], 0
    %s18 = scalar_lea.sflag [#allocation10], 1
    %19 = vsyncpa %s18, 0
    loop: start=0, step=1, limit=4
    $region2: #{tpu_custom_call.1} parent=1 // loop_pre_header
      _
    $region3: #{tpu_custom_call.1} parent=1 // loop_header
      %s21 = sphi 0, %s25
      %p22 = scmp.ge.s32.totalorder %s21, 4
      %s28 = sphi 0, %s40
      %s29 = sphi 0, %s36
      %s30 = sphi 0, %s28
      %s31 = sphi 0, %s29
      %s32 = sphi 0, %s30
      %s33 = sphi 0, %s31
      %s45 = sphi 0, %s47
      %s48 = sphi 0, %s45
      %s49 = sphi 0, %s48
      %s65 = sphi 0, %s49
      %s69 = sphi 0, %s69
      %s71 = sphi 0, %s69
      %s72 = sphi 0, %s71
      %s86 = sphi 0, %s72
      %s92 = sphi 0, %s94
      %s95 = sphi 0, %s92
      %s96 = sphi 0, %s95
      %s112 = sphi 0, %s96
      %s118 = sphi 0, %s120
      %s121 = sphi 0, %s118
      %s122 = sphi 0, %s121
      %s138 = sphi 0, %s122
      %s144 = sphi 0, %s146
      %s147 = sphi 0, %s144
      %s148 = sphi 0, %s147
      %s164 = sphi 0, %s148
    $region4: #{tpu_custom_call.1} parent=1 // loop_header_branch
      %24 = sbr.rel (%p22) target = $region8
    $region5: #{tpu_custom_call.1} parent=1 // loop_body
      %s26 = ssub.s32 %s21, 1
      %s27 = ssub.s32 %s21, 2
      %s34 = sadd.s32 1, %s29
      %p35 = scmp.ge.s32.totalorder %s34, 1
      %s36 = scalar_select %p35, 0, %s34
      %s37 = sadd.s32 1, %s28
      %s38 = scalar_select %p35, %s37, %s28
      %p39 = scmp.ge.s32.totalorder %s38, 2
      %s40 = scalar_select %p39, 0, %s38
      %s41 = ssub.s32 %s28, %s40
      %s42 = ssub.s32 %s29, %s36
      %s43 = sor.u32 %s41, %s42
      %p44 = scmp.eq.s32.totalorder %s43, 0
      %s46 = sadd.s32 %s45, 1
      %s47 = scalar_select %p44, %s45, %s46
      %p50 = pneg %p44
      %p51 = scmp.eq.s32.totalorder %s21, 1
      %p52 = por %p50, %p51
      %p53 = scmp.ne.s32.totalorder %s45, %s48
      %p54 = scmp.eq.s32.totalorder %s21, 0
      %p55 = por %p53, %p54
      %p56 = scmp.ne.s32.totalorder %s45, %s48
      %p57 = scmp.eq.s32.totalorder %s26, 1
      %p58 = por %p56, %p57
      %p59 = scmp.ne.s32.totalorder %s48, %s49
      %p60 = scmp.eq.s32.totalorder %s26, 0
      %p61 = por %p59, %p60
      %p62 = scmp.ne.s32.totalorder %s48, %s49
      %p63 = scmp.eq.s32.totalorder %s27, 1
      %p64 = por %p62, %p63
      %p66 = scmp.ne.s32.totalorder %s49, %s65
      %p67 = scmp.eq.s32.totalorder %s27, 0
      %p68 = por %p66, %p67
      %s70 = sadd.s32 %s69, 1
      %p73 = scmp.eq.s32.totalorder %s21, 1
      %p74 = scmp.ne.s32.totalorder %s69, %s71
      %p75 = scmp.eq.s32.totalorder %s21, 0
      %p76 = por %p74, %p75
      %p77 = scmp.ne.s32.totalorder %s69, %s71
      %p78 = scmp.eq.s32.totalorder %s26, 1
      %p79 = por %p77, %p78
      %p80 = scmp.ne.s32.totalorder %s71, %s72
      %p81 = scmp.eq.s32.totalorder %s26, 0
      %p82 = por %p80, %p81
      %p83 = scmp.ne.s32.totalorder %s71, %s72
      %p84 = scmp.eq.s32.totalorder %s27, 1
      %p85 = por %p83, %p84
      %p87 = scmp.ne.s32.totalorder %s72, %s86
      %p88 = scmp.eq.s32.totalorder %s27, 0
      %p89 = por %p87, %p88
      %s90 = ssub.s32 %s28, %s40
      %p91 = scmp.eq.s32.totalorder %s90, 0
      %s93 = sadd.s32 %s92, 1
      %s94 = scalar_select %p91, %s92, %s93
      %p97 = pneg %p91
      %p98 = scmp.eq.s32.totalorder %s21, 1
      %p99 = por %p97, %p98
      %p100 = scmp.ne.s32.totalorder %s92, %s95
      %p101 = scmp.eq.s32.totalorder %s21, 0
      %p102 = por %p100, %p101
      %p103 = scmp.ne.s32.totalorder %s92, %s95
      %p104 = scmp.eq.s32.totalorder %s26, 1
      %p105 = por %p103, %p104
      %p106 = scmp.ne.s32.totalorder %s95, %s96
      %p107 = scmp.eq.s32.totalorder %s26, 0
      %p108 = por %p106, %p107
      %p109 = scmp.ne.s32.totalorder %s95, %s96
      %p110 = scmp.eq.s32.totalorder %s27, 1
      %p111 = por %p109, %p110
      %p113 = scmp.ne.s32.totalorder %s96, %s112
      %p114 = scmp.eq.s32.totalorder %s27, 0
      %p115 = por %p113, %p114
      %s116 = ssub.s32 %s28, %s40
      %p117 = scmp.eq.s32.totalorder %s116, 0
      %s119 = sadd.s32 %s118, 1
      %s120 = scalar_select %p117, %s118, %s119
      %p123 = pneg %p117
      %p124 = scmp.eq.s32.totalorder %s21, 1
      %p125 = por %p123, %p124
      %p126 = scmp.ne.s32.totalorder %s118, %s121
      %p127 = scmp.eq.s32.totalorder %s21, 0
      %p128 = por %p126, %p127
      %p129 = scmp.ne.s32.totalorder %s118, %s121
      %p130 = scmp.eq.s32.totalorder %s26, 1
      %p131 = por %p129, %p130
      %p132 = scmp.ne.s32.totalorder %s121, %s122
      %p133 = scmp.eq.s32.totalorder %s26, 0
      %p134 = por %p132, %p133
      %p135 = scmp.ne.s32.totalorder %s121, %s122
      %p136 = scmp.eq.s32.totalorder %s27, 1
      %p137 = por %p135, %p136
      %p139 = scmp.ne.s32.totalorder %s122, %s138
      %p140 = scmp.eq.s32.totalorder %s27, 0
      %p141 = por %p139, %p140
      %s142 = ssub.s32 %s28, %s40
      %p143 = scmp.eq.s32.totalorder %s142, 0
      %s145 = sadd.s32 %s144, 1
      %s146 = scalar_select %p143, %s144, %s145
      %p149 = pneg %p143
      %p150 = scmp.eq.s32.totalorder %s21, 1
      %p151 = por %p149, %p150
      %p152 = scmp.ne.s32.totalorder %s144, %s147
      %p153 = scmp.eq.s32.totalorder %s21, 0
      %p154 = por %p152, %p153
      %p155 = scmp.ne.s32.totalorder %s144, %s147
      %p156 = scmp.eq.s32.totalorder %s26, 1
      %p157 = por %p155, %p156
      %p158 = scmp.ne.s32.totalorder %s147, %s148
      %p159 = scmp.eq.s32.totalorder %s26, 0
      %p160 = por %p158, %p159
      %p161 = scmp.ne.s32.totalorder %s147, %s148
      %p162 = scmp.eq.s32.totalorder %s27, 1
      %p163 = por %p161, %p162
      %p165 = scmp.ne.s32.totalorder %s148, %s164
      %p166 = scmp.eq.s32.totalorder %s27, 0
      %p167 = por %p165, %p166
      %p168 = scmp.le.s32.totalorder 1, %s21
      %p169 = scmp.lt.s32.totalorder %s21, 3
      %p170 = pnand %p168, %p169
      %p171 = pneg %p170
      // Predicated region
      $region9: #{tpu_custom_call.1} parent=5 // pred_check
        _
      $region10: #{tpu_custom_call.1} parent=5 // pred_check_branch
        %173 = sbr.rel (%p170) target = $region12
      $region11: #{tpu_custom_call.1} parent=5 // pred_region
        %s174 = ssub.s32 %s21, 1
        // Predicated region
        $region13: #{tpu_custom_call.1} parent=11 // pred_check
          %p175 = pneg %p82
        $region14: #{tpu_custom_call.1} parent=11 // pred_check_branch
          %177 = sbr.rel (%p175) target = $region16
        $region15: #{tpu_custom_call.1} parent=11 // pred_region
          %179 = vsyncadd [#allocation7], 0
          %s180 = sshll.u32 %s1, 4
          %s181 = int_to_ptr.hbm [resolvable:$true] %s180
          %s182 = sshll.u32 [#allocation6], 4
          %s183 = int_to_ptr.vmem [resolvable:$true] %s182
          %188 = dma.hbm_to_vmem [thread:$0]  %s181, 1024, %s183, [#allocation7], 64, 64, 4
        $region16: #{tpu_custom_call.1} parent=11 // pred_fallthru
          _
      $region12: #{tpu_custom_call.1} parent=5 // pred_fallthru
        _
      %p189 = scmp.lt.s32.totalorder %s21, 2
      // Predicated region
      $region17: #{tpu_custom_call.1} parent=5 // pred_check
        %p190 = pneg %p189
      $region18: #{tpu_custom_call.1} parent=5 // pred_check_branch
        %192 = sbr.rel (%p190) target = $region20
      $region19: #{tpu_custom_call.1} parent=5 // pred_region
        // Predicated region
        $region21: #{tpu_custom_call.1} parent=19 // pred_check
          %p193 = pneg %p55
        $region22: #{tpu_custom_call.1} parent=19 // pred_check_branch
          %195 = sbr.rel (%p193) target = $region24
        $region23: #{tpu_custom_call.1} parent=19 // pred_region
          %s196 = sand.u32 %s45, 1
          %s197 = scalar_lea.sflag [#allocation4], %s196
          %s198 = sand.u32 %s45, 1
          %s199 = smul.addr %s198, 128
          %s200 = scalar_lea.vmem [#allocation3], %s199
          %s201 = smul.u32 32, %s28
          %203 = vsyncadd %s197, 0
          %s204 = sadd.s32 %s29, %s201
          %s205 = smul.addr %s204, 4
          %s206 = scalar_lea.hbm %s0, %s205
          %s207 = sshll.u32 %s206, 4
          %s208 = int_to_ptr.hbm [resolvable:$true] %s207
          %s209 = sshll.u32 %s200, 4
          %s210 = int_to_ptr.vmem [resolvable:$true] %s209
          %215 = dma.hbm_to_vmem [thread:$0]  %s208, 2048, %s210, %s197, 64, 64, 4
        $region24: #{tpu_custom_call.1} parent=19 // pred_fallthru
          _
      $region20: #{tpu_custom_call.1} parent=5 // pred_fallthru
        _
      %p216 = scmp.le.s32.totalorder 1, %s21
      %p217 = scmp.lt.s32.totalorder %s21, 3
      %p218 = pnand %p216, %p217
      %p219 = pneg %p218
      // Predicated region
      $region25: #{tpu_custom_call.1} parent=5 // pred_check
        _
      $region26: #{tpu_custom_call.1} parent=5 // pred_check_branch
        %221 = sbr.rel (%p218) target = $region28
      $region27: #{tpu_custom_call.1} parent=5 // pred_region
        %s222 = ssub.s32 %s21, 1
        %s223 = sand.u32 %s48, 1
        %s224 = scalar_lea.sflag [#allocation4], %s223
        %s225 = sand.u32 %s48, 1
        %s226 = smul.addr %s225, 128
        %s227 = scalar_lea.vmem [#allocation3], %s226
        // Predicated region
        $region29: #{tpu_custom_call.1} parent=27 // pred_check
          %p228 = pneg %p61
        $region30: #{tpu_custom_call.1} parent=27 // pred_check_branch
          %230 = sbr.rel (%p228) target = $region32
        $region31: #{tpu_custom_call.1} parent=27 // pred_region
          %232 = dma.done %s224, 2048
        $region32: #{tpu_custom_call.1} parent=27 // pred_fallthru
          _
        // Predicated region
        $region33: #{tpu_custom_call.1} parent=27 // pred_check
          %p233 = pneg %p82
        $region34: #{tpu_custom_call.1} parent=27 // pred_check_branch
          %235 = sbr.rel (%p233) target = $region36
        $region35: #{tpu_custom_call.1} parent=27 // pred_region
          %237 = dma.done [#allocation7], 1024
        $region36: #{tpu_custom_call.1} parent=27 // pred_fallthru
          _
        %s238 = sand.u32 %s48, 1
        %s239 = scalar_lea.sflag [#allocation4], %s238
        %s240 = sand.u32 %s48, 1
        %s241 = smul.addr %s240, 128
        %s242 = scalar_lea.vmem [#allocation3], %s241
        %p243 = pneg %p61
        %p244 = pneg %p58
        %p245 = pneg %p82
        %p246 = pneg %p79
        %p247 = pneg %p108
        %p248 = pneg %p105
        %s249 = sand.u32 %s95, 1
        %s250 = scalar_lea.sflag [#allocation5], %s249
        %s251 = sand.u32 %s95, 1
        %s252 = smul.addr %s251, 128
        %s253 = scalar_lea.vmem [#allocation8], %s252
        %p254 = pneg %p134
        %p255 = pneg %p131
        %s256 = sand.u32 %s26, 1
        %s257 = scalar_lea.sflag [#allocation10], %s256
        %s258 = sand.u32 %s121, 1
        %s259 = smul.addr %s258, 8
        %s260 = scalar_lea.vmem [#allocation9], %s259
        %p261 = pneg %p160
        %p262 = pneg %p157
        %s263 = sand.u32 %s26, 1
        %s264 = scalar_lea.sflag [#allocation10], %s263
        %s265 = sand.u32 %s147, 1
        %s266 = smul.addr %s265, 8
        %s267 = scalar_lea.vmem [#allocation11], %s266
        %s268 = smul.u32 32, %s30
        %s269 = smul.u32 32, %s30
        %p270 = scmp.eq.s32.totalorder %s31, 0
        // Predicated region
        $region37: #{tpu_custom_call.1} parent=27 // pred_check
          %p271 = pneg %p270
        $region38: #{tpu_custom_call.1} parent=27 // pred_check_branch
          %273 = sbr.rel (%p271) target = $region40
        $region39: #{tpu_custom_call.1} parent=27 // pred_region
          %274 = vst [vmem:[#allocation2] sm:$0xff] 0.0
          %275 = vst [vmem:[#allocation2 + $0x8] sm:$0xff] 0.0
          %276 = vst [vmem:[#allocation2 + $0x10] sm:$0xff] 0.0
          %277 = vst [vmem:[#allocation2 + $0x18] sm:$0xff] 0.0
          %278 = vst [vmem:[#allocation2 + $0x20] sm:$0xff] 0.0
          %279 = vst [vmem:[#allocation2 + $0x28] sm:$0xff] 0.0
          %280 = vst [vmem:[#allocation2 + $0x30] sm:$0xff] 0.0
          %281 = vst [vmem:[#allocation2 + $0x38] sm:$0xff] 0.0
          %282 = vst [vmem:[#allocation2 + $0x40] sm:$0xff] 0.0
          %283 = vst [vmem:[#allocation2 + $0x48] sm:$0xff] 0.0
          %284 = vst [vmem:[#allocation2 + $0x50] sm:$0xff] 0.0
          %285 = vst [vmem:[#allocation2 + $0x58] sm:$0xff] 0.0
          %286 = vst [vmem:[#allocation2 + $0x60] sm:$0xff] 0.0
          %287 = vst [vmem:[#allocation2 + $0x68] sm:$0xff] 0.0
          %288 = vst [vmem:[#allocation2 + $0x70] sm:$0xff] 0.0
          %289 = vst [vmem:[#allocation2 + $0x78] sm:$0xff] 0.0
          %290 = vst [vmem:[#allocation2 + $0x80] sm:$0xff] 0.0
          %291 = vst [vmem:[#allocation2 + $0x88] sm:$0xff] 0.0
          %292 = vst [vmem:[#allocation2 + $0x90] sm:$0xff] 0.0
          %293 = vst [vmem:[#allocation2 + $0x98] sm:$0xff] 0.0
          %294 = vst [vmem:[#allocation2 + $0xa0] sm:$0xff] 0.0
          %295 = vst [vmem:[#allocation2 + $0xa8] sm:$0xff] 0.0
          %296 = vst [vmem:[#allocation2 + $0xb0] sm:$0xff] 0.0
          %297 = vst [vmem:[#allocation2 + $0xb8] sm:$0xff] 0.0
          %298 = vst [vmem:[#allocation2 + $0xc0] sm:$0xff] 0.0
          %299 = vst [vmem:[#allocation2 + $0xc8] sm:$0xff] 0.0
          %300 = vst [vmem:[#allocation2 + $0xd0] sm:$0xff] 0.0
          %301 = vst [vmem:[#allocation2 + $0xd8] sm:$0xff] 0.0
          %302 = vst [vmem:[#allocation2 + $0xe0] sm:$0xff] 0.0
          %303 = vst [vmem:[#allocation2 + $0xe8] sm:$0xff] 0.0
          %304 = vst [vmem:[#allocation2 + $0xf0] sm:$0xff] 0.0
          %305 = vst [vmem:[#allocation2 + $0xf8] sm:$0xff] 0.0
        $region40: #{tpu_custom_call.1} parent=27 // pred_fallthru
          _
        %s306 = smul.u32 %s31, 128
        %s307 = sshra.s32 %s306, 3
        %s308 = sand.u32 %s306, 7
        %s309 = smul.addr %s307, 4
        %s310 = scalar_lea.vmem [#allocation6], %s309
        %v311 = vld [vmem:[%s310] sm:$0xf]
        %v312 = vld [vmem:[%s310 + $0x4] sm:$0xf]
        %v313 = vld [vmem:[%s310 + $0x8] sm:$0xf]
        %v314 = vld [vmem:[%s310 + $0xc] sm:$0xf]
        %v315 = vld [vmem:[%s310 + $0x10] sm:$0xf]
        %v316 = vld [vmem:[%s310 + $0x14] sm:$0xf]
        %v317 = vld [vmem:[%s310 + $0x18] sm:$0xf]
        %v318 = vld [vmem:[%s310 + $0x1c] sm:$0xf]
        %v319 = vld [vmem:[%s310 + $0x20] sm:$0xf]
        %v320 = vld [vmem:[%s310 + $0x24] sm:$0xf]
        %v321 = vld [vmem:[%s310 + $0x28] sm:$0xf]
        %v322 = vld [vmem:[%s310 + $0x2c] sm:$0xf]
        %v323 = vld [vmem:[%s310 + $0x30] sm:$0xf]
        %v324 = vld [vmem:[%s310 + $0x34] sm:$0xf]
        %v325 = vld [vmem:[%s310 + $0x38] sm:$0xf]
        %v326 = vld [vmem:[%s310 + $0x3c] sm:$0xf]
        %v327 = vld [vmem:[#allocation2] sm:$0xff]
        %v328 = vld [vmem:[#allocation2 + $0x8] sm:$0xff]
        %v329 = vld [vmem:[#allocation2 + $0x10] sm:$0xff]
        %v330 = vld [vmem:[#allocation2 + $0x18] sm:$0xff]
        %v331 = vld [vmem:[#allocation2 + $0x20] sm:$0xff]
        %v332 = vld [vmem:[#allocation2 + $0x28] sm:$0xff]
        %v333 = vld [vmem:[#allocation2 + $0x30] sm:$0xff]
        %v334 = vld [vmem:[#allocation2 + $0x38] sm:$0xff]
        %v335 = vld [vmem:[#allocation2 + $0x40] sm:$0xff]
        %v336 = vld [vmem:[#allocation2 + $0x48] sm:$0xff]
        %v337 = vld [vmem:[#allocation2 + $0x50] sm:$0xff]
        %v338 = vld [vmem:[#allocation2 + $0x58] sm:$0xff]
        %v339 = vld [vmem:[#allocation2 + $0x60] sm:$0xff]
        %v340 = vld [vmem:[#allocation2 + $0x68] sm:$0xff]
        %v341 = vld [vmem:[#allocation2 + $0x70] sm:$0xff]
        %v342 = vld [vmem:[#allocation2 + $0x78] sm:$0xff]
        %v343 = vld [vmem:[#allocation2 + $0x80] sm:$0xff]
        %v344 = vld [vmem:[#allocation2 + $0x88] sm:$0xff]
        %v345 = vld [vmem:[#allocation2 + $0x90] sm:$0xff]
        %v346 = vld [vmem:[#allocation2 + $0x98] sm:$0xff]
        %v347 = vld [vmem:[#allocation2 + $0xa0] sm:$0xff]
        %v348 = vld [vmem:[#allocation2 + $0xa8] sm:$0xff]
        %v349 = vld [vmem:[#allocation2 + $0xb0] sm:$0xff]
        %v350 = vld [vmem:[#allocation2 + $0xb8] sm:$0xff]
        %v351 = vld [vmem:[#allocation2 + $0xc0] sm:$0xff]
        %v352 = vld [vmem:[#allocation2 + $0xc8] sm:$0xff]
        %v353 = vld [vmem:[#allocation2 + $0xd0] sm:$0xff]
        %v354 = vld [vmem:[#allocation2 + $0xd8] sm:$0xff]
        %v355 = vld [vmem:[#allocation2 + $0xe0] sm:$0xff]
        %v356 = vld [vmem:[#allocation2 + $0xe8] sm:$0xff]
        %v357 = vld [vmem:[#allocation2 + $0xf0] sm:$0xff]
        %v358 = vld [vmem:[#allocation2 + $0xf8] sm:$0xff]
        %v359 = vld [vmem:[%s227] sm:$0xf]
        %v360 = vld [vmem:[%s227 + $0x4] sm:$0xf]
        %v361 = vld [vmem:[%s227 + $0x8] sm:$0xf]
        %v362 = vld [vmem:[%s227 + $0xc] sm:$0xf]
        %v363 = vld [vmem:[%s227 + $0x10] sm:$0xf]
        %v364 = vld [vmem:[%s227 + $0x14] sm:$0xf]
        %v365 = vld [vmem:[%s227 + $0x18] sm:$0xf]
        %v366 = vld [vmem:[%s227 + $0x1c] sm:$0xf]
        %v367 = vld [vmem:[%s227 + $0x20] sm:$0xf]
        %v368 = vld [vmem:[%s227 + $0x24] sm:$0xf]
        %v369 = vld [vmem:[%s227 + $0x28] sm:$0xf]
        %v370 = vld [vmem:[%s227 + $0x2c] sm:$0xf]
        %v371 = vld [vmem:[%s227 + $0x30] sm:$0xf]
        %v372 = vld [vmem:[%s227 + $0x34] sm:$0xf]
        %v373 = vld [vmem:[%s227 + $0x38] sm:$0xf]
        %v374 = vld [vmem:[%s227 + $0x3c] sm:$0xf]
        %v375 = vld [vmem:[%s227 + $0x40] sm:$0xf]
        %v376 = vld [vmem:[%s227 + $0x44] sm:$0xf]
        %v377 = vld [vmem:[%s227 + $0x48] sm:$0xf]
        %v378 = vld [vmem:[%s227 + $0x4c] sm:$0xf]
        %v379 = vld [vmem:[%s227 + $0x50] sm:$0xf]
        %v380 = vld [vmem:[%s227 + $0x54] sm:$0xf]
        %v381 = vld [vmem:[%s227 + $0x58] sm:$0xf]
        %v382 = vld [vmem:[%s227 + $0x5c] sm:$0xf]
        %v383 = vld [vmem:[%s227 + $0x60] sm:$0xf]
        %v384 = vld [vmem:[%s227 + $0x64] sm:$0xf]
        %v385 = vld [vmem:[%s227 + $0x68] sm:$0xf]
        %v386 = vld [vmem:[%s227 + $0x6c] sm:$0xf]
        %v387 = vld [vmem:[%s227 + $0x70] sm:$0xf]
        %v388 = vld [vmem:[%s227 + $0x74] sm:$0xf]
        %v389 = vld [vmem:[%s227 + $0x78] sm:$0xf]
        %v390 = vld [vmem:[%s227 + $0x7c] sm:$0xf]
        %v423 = vunpack.c.l.b16 %v359
        %v424 = vunpack.c.l.b16 %v360
        %v425 = vunpack.c.l.b16 %v361
        %v426 = vunpack.c.l.b16 %v362
        %v427 = vunpack.c.l.b16 %v363
        %v428 = vunpack.c.l.b16 %v364
        %v429 = vunpack.c.l.b16 %v365
        %v430 = vunpack.c.l.b16 %v366
        %v431 = vunpack.c.l.b16 %v367
        %v432 = vunpack.c.l.b16 %v368
        %v433 = vunpack.c.l.b16 %v369
        %v434 = vunpack.c.l.b16 %v370
        %v435 = vunpack.c.l.b16 %v371
        %v436 = vunpack.c.l.b16 %v372
        %v437 = vunpack.c.l.b16 %v373
        %v438 = vunpack.c.l.b16 %v374
        %v439 = vunpack.c.l.b16 %v375
        %v440 = vunpack.c.l.b16 %v376
        %v441 = vunpack.c.l.b16 %v377
        %v442 = vunpack.c.l.b16 %v378
        %v443 = vunpack.c.l.b16 %v379
        %v444 = vunpack.c.l.b16 %v380
        %v445 = vunpack.c.l.b16 %v381
        %v446 = vunpack.c.l.b16 %v382
        %v447 = vunpack.c.l.b16 %v383
        %v448 = vunpack.c.l.b16 %v384
        %v449 = vunpack.c.l.b16 %v385
        %v450 = vunpack.c.l.b16 %v386
        %v451 = vunpack.c.l.b16 %v387
        %v452 = vunpack.c.l.b16 %v388
        %v453 = vunpack.c.l.b16 %v389
        %v454 = vunpack.c.l.b16 %v390
        %v455 = vpack.c.b16 %v424, %v423
        %v456 = vpack.c.b16 %v426, %v425
        %v457 = vpack.c.b16 %v428, %v427
        %v458 = vpack.c.b16 %v430, %v429
        %v459 = vpack.c.b16 %v432, %v431
        %v460 = vpack.c.b16 %v434, %v433
        %v461 = vpack.c.b16 %v436, %v435
        %v462 = vpack.c.b16 %v438, %v437
        %v463 = vpack.c.b16 %v440, %v439
        %v464 = vpack.c.b16 %v442, %v441
        %v465 = vpack.c.b16 %v444, %v443
        %v466 = vpack.c.b16 %v446, %v445
        %v467 = vpack.c.b16 %v448, %v447
        %v468 = vpack.c.b16 %v450, %v449
        %v469 = vpack.c.b16 %v452, %v451
        %v470 = vpack.c.b16 %v454, %v453
        %v503 = vunpack.c.l.b16 %v311
        %v504 = vunpack.c.l.b16 %v312
        %v505 = vunpack.c.l.b16 %v313
        %v506 = vunpack.c.l.b16 %v314
        %v507 = vunpack.c.l.b16 %v315
        %v508 = vunpack.c.l.b16 %v316
        %v509 = vunpack.c.l.b16 %v317
        %v510 = vunpack.c.l.b16 %v318
        %v511 = vunpack.c.l.b16 %v319
        %v512 = vunpack.c.l.b16 %v320
        %v513 = vunpack.c.l.b16 %v321
        %v514 = vunpack.c.l.b16 %v322
        %v515 = vunpack.c.l.b16 %v323
        %v516 = vunpack.c.l.b16 %v324
        %v517 = vunpack.c.l.b16 %v325
        %v518 = vunpack.c.l.b16 %v326
        %v519 = vpack.c.b16 %v504, %v503
        %v520 = vpack.c.b16 %v506, %v505
        %v521 = vpack.c.b16 %v508, %v507
        %v522 = vpack.c.b16 %v510, %v509
        %v523 = vpack.c.b16 %v512, %v511
        %v524 = vpack.c.b16 %v514, %v513
        %v525 = vpack.c.b16 %v516, %v515
        %v526 = vpack.c.b16 %v518, %v517
        %535 = vmatpush.bf16.msra.mxu0 %v526
        %536 = vmatpush.bf16.msra.mxu0 %v525
        %537 = vmatpush.bf16.msra.mxu0 %v524
        %538 = vmatpush.bf16.msra.mxu0 %v523
        %539 = vmatpush.bf16.msra.mxu0 %v522
        %540 = vmatpush.bf16.msra.mxu0 %v521
        %541 = vmatpush.bf16.msra.mxu0 %v520
        %542 = vmatpush.bf16.msra.mxu0 %v519
        %543 = vmatmul.bf16.gmra.mxu0 %v455
        %v544 = vpop.f32.mrf.mxu0
        %v545 = vadd.f32 0.0, %v544
        %v546 = vpop.f32.mrf.mxu0
        %v547 = vadd.f32 0.0, %v546
        %548 = vmatmul.bf16.gmra.mxu0 %v456
        %v549 = vpop.f32.mrf.mxu0
        %v550 = vadd.f32 0.0, %v549
        %v551 = vpop.f32.mrf.mxu0
        %v552 = vadd.f32 0.0, %v551
        %553 = vmatmul.bf16.gmra.mxu0 %v457
        %v554 = vpop.f32.mrf.mxu0
        %v555 = vadd.f32 0.0, %v554
        %v556 = vpop.f32.mrf.mxu0
        %v557 = vadd.f32 0.0, %v556
        %558 = vmatmul.bf16.gmra.mxu0 %v458
        %v559 = vpop.f32.mrf.mxu0
        %v560 = vadd.f32 0.0, %v559
        %v561 = vpop.f32.mrf.mxu0
        %v562 = vadd.f32 0.0, %v561
        %563 = vmatmul.bf16.gmra.mxu0 %v459
        %v564 = vpop.f32.mrf.mxu0
        %v565 = vadd.f32 0.0, %v564
        %v566 = vpop.f32.mrf.mxu0
        %v567 = vadd.f32 0.0, %v566
        %568 = vmatmul.bf16.gmra.mxu0 %v460
        %v569 = vpop.f32.mrf.mxu0
        %v570 = vadd.f32 0.0, %v569
        %v571 = vpop.f32.mrf.mxu0
        %v572 = vadd.f32 0.0, %v571
        %573 = vmatmul.bf16.gmra.mxu0 %v461
        %v574 = vpop.f32.mrf.mxu0
        %v575 = vadd.f32 0.0, %v574
        %v576 = vpop.f32.mrf.mxu0
        %v577 = vadd.f32 0.0, %v576
        %578 = vmatmul.bf16.gmra.mxu0 %v462
        %v579 = vpop.f32.mrf.mxu0
        %v580 = vadd.f32 0.0, %v579
        %v581 = vpop.f32.mrf.mxu0
        %v582 = vadd.f32 0.0, %v581
        %583 = vmatmul.bf16.gmra.mxu0 %v463
        %v584 = vpop.f32.mrf.mxu0
        %v585 = vadd.f32 0.0, %v584
        %v586 = vpop.f32.mrf.mxu0
        %v587 = vadd.f32 0.0, %v586
        %588 = vmatmul.bf16.gmra.mxu0 %v464
        %v589 = vpop.f32.mrf.mxu0
        %v590 = vadd.f32 0.0, %v589
        %v591 = vpop.f32.mrf.mxu0
        %v592 = vadd.f32 0.0, %v591
        %593 = vmatmul.bf16.gmra.mxu0 %v465
        %v594 = vpop.f32.mrf.mxu0
        %v595 = vadd.f32 0.0, %v594
        %v596 = vpop.f32.mrf.mxu0
        %v597 = vadd.f32 0.0, %v596
        %598 = vmatmul.bf16.gmra.mxu0 %v466
        %v599 = vpop.f32.mrf.mxu0
        %v600 = vadd.f32 0.0, %v599
        %v601 = vpop.f32.mrf.mxu0
        %v602 = vadd.f32 0.0, %v601
        %603 = vmatmul.bf16.gmra.mxu0 %v467
        %v604 = vpop.f32.mrf.mxu0
        %v605 = vadd.f32 0.0, %v604
        %v606 = vpop.f32.mrf.mxu0
        %v607 = vadd.f32 0.0, %v606
        %608 = vmatmul.bf16.gmra.mxu0 %v468
        %v609 = vpop.f32.mrf.mxu0
        %v610 = vadd.f32 0.0, %v609
        %v611 = vpop.f32.mrf.mxu0
        %v612 = vadd.f32 0.0, %v611
        %613 = vmatmul.bf16.gmra.mxu0 %v469
        %v614 = vpop.f32.mrf.mxu0
        %v615 = vadd.f32 0.0, %v614
        %v616 = vpop.f32.mrf.mxu0
        %v617 = vadd.f32 0.0, %v616
        %618 = vmatmul.bf16.gmra.mxu0 %v470
        %v619 = vpop.f32.mrf.mxu0
        %v620 = vadd.f32 0.0, %v619
        %v621 = vpop.f32.mrf.mxu0
        %v622 = vadd.f32 0.0, %v621
        %623 = vdwg.mxu0
        %v624 = vadd.f32 %v327, %v545
        %v625 = vadd.f32 %v328, %v547
        %v626 = vadd.f32 %v329, %v550
        %v627 = vadd.f32 %v330, %v552
        %v628 = vadd.f32 %v331, %v555
        %v629 = vadd.f32 %v332, %v557
        %v630 = vadd.f32 %v333, %v560
        %v631 = vadd.f32 %v334, %v562
        %v632 = vadd.f32 %v335, %v565
        %v633 = vadd.f32 %v336, %v567
        %v634 = vadd.f32 %v337, %v570
        %v635 = vadd.f32 %v338, %v572
        %v636 = vadd.f32 %v339, %v575
        %v637 = vadd.f32 %v340, %v577
        %v638 = vadd.f32 %v341, %v580
        %v639 = vadd.f32 %v342, %v582
        %v640 = vadd.f32 %v343, %v585
        %v641 = vadd.f32 %v344, %v587
        %v642 = vadd.f32 %v345, %v590
        %v643 = vadd.f32 %v346, %v592
        %v644 = vadd.f32 %v347, %v595
        %v645 = vadd.f32 %v348, %v597
        %v646 = vadd.f32 %v349, %v600
        %v647 = vadd.f32 %v350, %v602
        %v648 = vadd.f32 %v351, %v605
        %v649 = vadd.f32 %v352, %v607
        %v650 = vadd.f32 %v353, %v610
        %v651 = vadd.f32 %v354, %v612
        %v652 = vadd.f32 %v355, %v615
        %v653 = vadd.f32 %v356, %v617
        %v654 = vadd.f32 %v357, %v620
        %v655 = vadd.f32 %v358, %v622
        %656 = vst [vmem:[#allocation2] sm:$0xff] %v624
        %657 = vst [vmem:[#allocation2 + $0x8] sm:$0xff] %v625
        %658 = vst [vmem:[#allocation2 + $0x10] sm:$0xff] %v626
        %659 = vst [vmem:[#allocation2 + $0x18] sm:$0xff] %v627
        %660 = vst [vmem:[#allocation2 + $0x20] sm:$0xff] %v628
        %661 = vst [vmem:[#allocation2 + $0x28] sm:$0xff] %v629
        %662 = vst [vmem:[#allocation2 + $0x30] sm:$0xff] %v630
        %663 = vst [vmem:[#allocation2 + $0x38] sm:$0xff] %v631
        %664 = vst [vmem:[#allocation2 + $0x40] sm:$0xff] %v632
        %665 = vst [vmem:[#allocation2 + $0x48] sm:$0xff] %v633
        %666 = vst [vmem:[#allocation2 + $0x50] sm:$0xff] %v634
        %667 = vst [vmem:[#allocation2 + $0x58] sm:$0xff] %v635
        %668 = vst [vmem:[#allocation2 + $0x60] sm:$0xff] %v636
        %669 = vst [vmem:[#allocation2 + $0x68] sm:$0xff] %v637
        %670 = vst [vmem:[#allocation2 + $0x70] sm:$0xff] %v638
        %671 = vst [vmem:[#allocation2 + $0x78] sm:$0xff] %v639
        %672 = vst [vmem:[#allocation2 + $0x80] sm:$0xff] %v640
        %673 = vst [vmem:[#allocation2 + $0x88] sm:$0xff] %v641
        %674 = vst [vmem:[#allocation2 + $0x90] sm:$0xff] %v642
        %675 = vst [vmem:[#allocation2 + $0x98] sm:$0xff] %v643
        %676 = vst [vmem:[#allocation2 + $0xa0] sm:$0xff] %v644
        %677 = vst [vmem:[#allocation2 + $0xa8] sm:$0xff] %v645
        %678 = vst [vmem:[#allocation2 + $0xb0] sm:$0xff] %v646
        %679 = vst [vmem:[#allocation2 + $0xb8] sm:$0xff] %v647
        %680 = vst [vmem:[#allocation2 + $0xc0] sm:$0xff] %v648
        %681 = vst [vmem:[#allocation2 + $0xc8] sm:$0xff] %v649
        %682 = vst [vmem:[#allocation2 + $0xd0] sm:$0xff] %v650
        %683 = vst [vmem:[#allocation2 + $0xd8] sm:$0xff] %v651
        %684 = vst [vmem:[#allocation2 + $0xe0] sm:$0xff] %v652
        %685 = vst [vmem:[#allocation2 + $0xe8] sm:$0xff] %v653
        %686 = vst [vmem:[#allocation2 + $0xf0] sm:$0xff] %v654
        %687 = vst [vmem:[#allocation2 + $0xf8] sm:$0xff] %v655
        // Predicated region
        $region41: #{tpu_custom_call.1} parent=27 // pred_check
          %p688 = pneg %p270
        $region42: #{tpu_custom_call.1} parent=27 // pred_check_branch
          %690 = sbr.rel (%p688) target = $region44
        $region43: #{tpu_custom_call.1} parent=27 // pred_region
          %v691 = vld [vmem:[#allocation2] sm:$0xff]
          %v692 = vld [vmem:[#allocation2 + $0x8] sm:$0xff]
          %v693 = vld [vmem:[#allocation2 + $0x10] sm:$0xff]
          %v694 = vld [vmem:[#allocation2 + $0x18] sm:$0xff]
          %v695 = vld [vmem:[#allocation2 + $0x20] sm:$0xff]
          %v696 = vld [vmem:[#allocation2 + $0x28] sm:$0xff]
          %v697 = vld [vmem:[#allocation2 + $0x30] sm:$0xff]
          %v698 = vld [vmem:[#allocation2 + $0x38] sm:$0xff]
          %v699 = vld [vmem:[#allocation2 + $0x40] sm:$0xff]
          %v700 = vld [vmem:[#allocation2 + $0x48] sm:$0xff]
          %v701 = vld [vmem:[#allocation2 + $0x50] sm:$0xff]
          %v702 = vld [vmem:[#allocation2 + $0x58] sm:$0xff]
          %v703 = vld [vmem:[#allocation2 + $0x60] sm:$0xff]
          %v704 = vld [vmem:[#allocation2 + $0x68] sm:$0xff]
          %v705 = vld [vmem:[#allocation2 + $0x70] sm:$0xff]
          %v706 = vld [vmem:[#allocation2 + $0x78] sm:$0xff]
          %v707 = vld [vmem:[#allocation2 + $0x80] sm:$0xff]
          %v708 = vld [vmem:[#allocation2 + $0x88] sm:$0xff]
          %v709 = vld [vmem:[#allocation2 + $0x90] sm:$0xff]
          %v710 = vld [vmem:[#allocation2 + $0x98] sm:$0xff]
          %v711 = vld [vmem:[#allocation2 + $0xa0] sm:$0xff]
          %v712 = vld [vmem:[#allocation2 + $0xa8] sm:$0xff]
          %v713 = vld [vmem:[#allocation2 + $0xb0] sm:$0xff]
          %v714 = vld [vmem:[#allocation2 + $0xb8] sm:$0xff]
          %v715 = vld [vmem:[#allocation2 + $0xc0] sm:$0xff]
          %v716 = vld [vmem:[#allocation2 + $0xc8] sm:$0xff]
          %v717 = vld [vmem:[#allocation2 + $0xd0] sm:$0xff]
          %v718 = vld [vmem:[#allocation2 + $0xd8] sm:$0xff]
          %v719 = vld [vmem:[#allocation2 + $0xe0] sm:$0xff]
          %v720 = vld [vmem:[#allocation2 + $0xe8] sm:$0xff]
          %v721 = vld [vmem:[#allocation2 + $0xf0] sm:$0xff]
          %v722 = vld [vmem:[#allocation2 + $0xf8] sm:$0xff]
          %v723 = vpack.c.bf16 %v691, %v691
          %v724 = vpack.c.bf16 %v692, %v692
          %v725 = vpack.c.bf16 %v693, %v693
          %v726 = vpack.c.bf16 %v694, %v694
          %v727 = vpack.c.bf16 %v695, %v695
          %v728 = vpack.c.bf16 %v696, %v696
          %v729 = vpack.c.bf16 %v697, %v697
          %v730 = vpack.c.bf16 %v698, %v698
          %v731 = vpack.c.bf16 %v699, %v699
          %v732 = vpack.c.bf16 %v700, %v700
          %v733 = vpack.c.bf16 %v701, %v701
          %v734 = vpack.c.bf16 %v702, %v702
          %v735 = vpack.c.bf16 %v703, %v703
          %v736 = vpack.c.bf16 %v704, %v704
          %v737 = vpack.c.bf16 %v705, %v705
          %v738 = vpack.c.bf16 %v706, %v706
          %v739 = vpack.c.bf16 %v707, %v707
          %v740 = vpack.c.bf16 %v708, %v708
          %v741 = vpack.c.bf16 %v709, %v709
          %v742 = vpack.c.bf16 %v710, %v710
          %v743 = vpack.c.bf16 %v711, %v711
          %v744 = vpack.c.bf16 %v712, %v712
          %v745 = vpack.c.bf16 %v713, %v713
          %v746 = vpack.c.bf16 %v714, %v714
          %v747 = vpack.c.bf16 %v715, %v715
          %v748 = vpack.c.bf16 %v716, %v716
          %v749 = vpack.c.bf16 %v717, %v717
          %v750 = vpack.c.bf16 %v718, %v718
          %v751 = vpack.c.bf16 %v719, %v719
          %v752 = vpack.c.bf16 %v720, %v720
          %v753 = vpack.c.bf16 %v721, %v721
          %v754 = vpack.c.bf16 %v722, %v722
          %755 = vst [vmem:[%s253] sm:$0xf] %v723
          %756 = vst [vmem:[%s253 + $0x4] sm:$0xf] %v724
          %757 = vst [vmem:[%s253 + $0x8] sm:$0xf] %v725
          %758 = vst [vmem:[%s253 + $0xc] sm:$0xf] %v726
          %759 = vst [vmem:[%s253 + $0x10] sm:$0xf] %v727
          %760 = vst [vmem:[%s253 + $0x14] sm:$0xf] %v728
          %761 = vst [vmem:[%s253 + $0x18] sm:$0xf] %v729
          %762 = vst [vmem:[%s253 + $0x1c] sm:$0xf] %v730
          %763 = vst [vmem:[%s253 + $0x20] sm:$0xf] %v731
          %764 = vst [vmem:[%s253 + $0x24] sm:$0xf] %v732
          %765 = vst [vmem:[%s253 + $0x28] sm:$0xf] %v733
          %766 = vst [vmem:[%s253 + $0x2c] sm:$0xf] %v734
          %767 = vst [vmem:[%s253 + $0x30] sm:$0xf] %v735
          %768 = vst [vmem:[%s253 + $0x34] sm:$0xf] %v736
          %769 = vst [vmem:[%s253 + $0x38] sm:$0xf] %v737
          %770 = vst [vmem:[%s253 + $0x3c] sm:$0xf] %v738
          %771 = vst [vmem:[%s253 + $0x40] sm:$0xf] %v739
          %772 = vst [vmem:[%s253 + $0x44] sm:$0xf] %v740
          %773 = vst [vmem:[%s253 + $0x48] sm:$0xf] %v741
          %774 = vst [vmem:[%s253 + $0x4c] sm:$0xf] %v742
          %775 = vst [vmem:[%s253 + $0x50] sm:$0xf] %v743
          %776 = vst [vmem:[%s253 + $0x54] sm:$0xf] %v744
          %777 = vst [vmem:[%s253 + $0x58] sm:$0xf] %v745
          %778 = vst [vmem:[%s253 + $0x5c] sm:$0xf] %v746
          %779 = vst [vmem:[%s253 + $0x60] sm:$0xf] %v747
          %780 = vst [vmem:[%s253 + $0x64] sm:$0xf] %v748
          %781 = vst [vmem:[%s253 + $0x68] sm:$0xf] %v749
          %782 = vst [vmem:[%s253 + $0x6c] sm:$0xf] %v750
          %783 = vst [vmem:[%s253 + $0x70] sm:$0xf] %v751
          %784 = vst [vmem:[%s253 + $0x74] sm:$0xf] %v752
          %785 = vst [vmem:[%s253 + $0x78] sm:$0xf] %v753
          %786 = vst [vmem:[%s253 + $0x7c] sm:$0xf] %v754
          %v787 = vadd.f32 %v691, %v692
          %v788 = vadd.f32 %v787, %v693
          %v789 = vadd.f32 %v788, %v694
          %v790 = vadd.f32 %v789, %v695
          %v791 = vadd.f32 %v790, %v696
          %v792 = vadd.f32 %v791, %v697
          %v793 = vadd.f32 %v792, %v698
          %v794 = vadd.f32 %v793, %v699
          %v795 = vadd.f32 %v794, %v700
          %v796 = vadd.f32 %v795, %v701
          %v797 = vadd.f32 %v796, %v702
          %v798 = vadd.f32 %v797, %v703
          %v799 = vadd.f32 %v798, %v704
          %v800 = vadd.f32 %v799, %v705
          %v801 = vadd.f32 %v800, %v706
          %v802 = vadd.f32 %v801, %v707
          %v803 = vadd.f32 %v802, %v708
          %v804 = vadd.f32 %v803, %v709
          %v805 = vadd.f32 %v804, %v710
          %v806 = vadd.f32 %v805, %v711
          %v807 = vadd.f32 %v806, %v712
          %v808 = vadd.f32 %v807, %v713
          %v809 = vadd.f32 %v808, %v714
          %v810 = vadd.f32 %v809, %v715
          %v811 = vadd.f32 %v810, %v716
          %v812 = vadd.f32 %v811, %v717
          %v813 = vadd.f32 %v812, %v718
          %v814 = vadd.f32 %v813, %v719
          %v815 = vadd.f32 %v814, %v720
          %v816 = vadd.f32 %v815, %v721
          %v817 = vadd.f32 %v816, %v722
          %v818 = vrot.slane %v817, 4
          %v819 = vadd.f32 %v817, %v818
          %v820 = vrot.slane %v819, 2
          %v821 = vadd.f32 %v819, %v820
          %v822 = vrot.slane %v821, 1
          %v823 = vadd.f32 %v821, %v822
          %v824 = vmul.f32 %v691, %v691
          %v825 = vmul.f32 %v692, %v692
          %v826 = vmul.f32 %v693, %v693
          %v827 = vmul.f32 %v694, %v694
          %v828 = vmul.f32 %v695, %v695
          %v829 = vmul.f32 %v696, %v696
          %v830 = vmul.f32 %v697, %v697
          %v831 = vmul.f32 %v698, %v698
          %v832 = vmul.f32 %v699, %v699
          %v833 = vmul.f32 %v700, %v700
          %v834 = vmul.f32 %v701, %v701
          %v835 = vmul.f32 %v702, %v702
          %v836 = vmul.f32 %v703, %v703
          %v837 = vmul.f32 %v704, %v704
          %v838 = vmul.f32 %v705, %v705
          %v839 = vmul.f32 %v706, %v706
          %v840 = vmul.f32 %v707, %v707
          %v841 = vmul.f32 %v708, %v708
          %v842 = vmul.f32 %v709, %v709
          %v843 = vmul.f32 %v710, %v710
          %v844 = vmul.f32 %v711, %v711
          %v845 = vmul.f32 %v712, %v712
          %v846 = vmul.f32 %v713, %v713
          %v847 = vmul.f32 %v714, %v714
          %v848 = vmul.f32 %v715, %v715
          %v849 = vmul.f32 %v716, %v716
          %v850 = vmul.f32 %v717, %v717
          %v851 = vmul.f32 %v718, %v718
          %v852 = vmul.f32 %v719, %v719
          %v853 = vmul.f32 %v720, %v720
          %v854 = vmul.f32 %v721, %v721
          %v855 = vmul.f32 %v722, %v722
          %v856 = vadd.f32 %v824, %v825
          %v857 = vadd.f32 %v856, %v826
          %v858 = vadd.f32 %v857, %v827
          %v859 = vadd.f32 %v858, %v828
          %v860 = vadd.f32 %v859, %v829
          %v861 = vadd.f32 %v860, %v830
          %v862 = vadd.f32 %v861, %v831
          %v863 = vadd.f32 %v862, %v832
          %v864 = vadd.f32 %v863, %v833
          %v865 = vadd.f32 %v864, %v834
          %v866 = vadd.f32 %v865, %v835
          %v867 = vadd.f32 %v866, %v836
          %v868 = vadd.f32 %v867, %v837
          %v869 = vadd.f32 %v868, %v838
          %v870 = vadd.f32 %v869, %v839
          %v871 = vadd.f32 %v870, %v840
          %v872 = vadd.f32 %v871, %v841
          %v873 = vadd.f32 %v872, %v842
          %v874 = vadd.f32 %v873, %v843
          %v875 = vadd.f32 %v874, %v844
          %v876 = vadd.f32 %v875, %v845
          %v877 = vadd.f32 %v876, %v846
          %v878 = vadd.f32 %v877, %v847
          %v879 = vadd.f32 %v878, %v848
          %v880 = vadd.f32 %v879, %v849
          %v881 = vadd.f32 %v880, %v850
          %v882 = vadd.f32 %v881, %v851
          %v883 = vadd.f32 %v882, %v852
          %v884 = vadd.f32 %v883, %v853
          %v885 = vadd.f32 %v884, %v854
          %v886 = vadd.f32 %v885, %v855
          %v887 = vrot.slane %v886, 4
          %v888 = vadd.f32 %v886, %v887
          %v889 = vrot.slane %v888, 2
          %v890 = vadd.f32 %v888, %v889
          %v891 = vrot.slane %v890, 1
          %v892 = vadd.f32 %v890, %v891
          %893 = vst [vmem:[%s260] sm:$0xff] %v823
          %894 = vst [vmem:[%s267] sm:$0xff] %v892
        $region44: #{tpu_custom_call.1} parent=27 // pred_fallthru
          _
        %s895 = sand.u32 %s95, 1
        %s896 = scalar_lea.sflag [#allocation5], %s895
        %s897 = sand.u32 %s95, 1
        %s898 = smul.addr %s897, 128
        %s899 = scalar_lea.vmem [#allocation8], %s898
        %s900 = sand.u32 %s26, 1
        %s901 = scalar_lea.sflag [#allocation10], %s900
        %s902 = sand.u32 %s121, 1
        %s903 = smul.addr %s902, 8
        %s904 = scalar_lea.vmem [#allocation9], %s903
        %s905 = sand.u32 %s26, 1
        %s906 = scalar_lea.sflag [#allocation10], %s905
        %s907 = sand.u32 %s147, 1
        %s908 = smul.addr %s907, 8
        %s909 = scalar_lea.vmem [#allocation11], %s908
        // Predicated region
        $region45: #{tpu_custom_call.1} parent=27 // pred_check
          %p910 = pneg %p105
        $region46: #{tpu_custom_call.1} parent=27 // pred_check_branch
          %912 = sbr.rel (%p910) target = $region48
        $region47: #{tpu_custom_call.1} parent=27 // pred_region
          %s913 = smul.u32 32, %s30
          %915 = vsyncadd %s896, 0
          %s916 = smul.addr %s913, 4
          %s917 = scalar_lea.hbm %s2, %s916
          %s918 = sshll.u32 %s899, 4
          %s919 = int_to_ptr.vmem [resolvable:$true] %s918
          %s920 = sshll.u32 %s917, 4
          %s921 = int_to_ptr.hbm [resolvable:$true] %s920
          %926 = dma.vmem_to_hbm [thread:$0]  %s919, 2048, %s921, %s896, 64, 64, 4
        $region48: #{tpu_custom_call.1} parent=27 // pred_fallthru
          _
        // Predicated region
        $region49: #{tpu_custom_call.1} parent=27 // pred_check
          %p927 = pneg %p131
        $region50: #{tpu_custom_call.1} parent=27 // pred_check_branch
          %929 = sbr.rel (%p927) target = $region52
        $region51: #{tpu_custom_call.1} parent=27 // pred_region
          %931 = vsyncadd %s901, 0
          %s932 = smul.addr %s30, 8
          %s933 = scalar_lea.hbm %s3, %s932
          %s935 = sshll.u32 %s904, 4
          %s936 = int_to_ptr.vmem [resolvable:$true] %s935
          %s937 = sshll.u32 %s933, 4
          %s938 = int_to_ptr.hbm [resolvable:$true] %s937
          %940 = dma.vmem_to_hbm [thread:$0]  %s936, 128, %s938, %s901
        $region52: #{tpu_custom_call.1} parent=27 // pred_fallthru
          _
        // Predicated region
        $region53: #{tpu_custom_call.1} parent=27 // pred_check
          %p941 = pneg %p157
        $region54: #{tpu_custom_call.1} parent=27 // pred_check_branch
          %943 = sbr.rel (%p941) target = $region56
        $region55: #{tpu_custom_call.1} parent=27 // pred_region
          %945 = vsyncadd %s906, 0
          %s946 = smul.addr %s30, 8
          %s947 = scalar_lea.hbm %s4, %s946
          %s949 = sshll.u32 %s909, 4
          %s950 = int_to_ptr.vmem [resolvable:$true] %s949
          %s951 = sshll.u32 %s947, 4
          %s952 = int_to_ptr.hbm [resolvable:$true] %s951
          %954 = dma.vmem_to_hbm [thread:$0]  %s950, 128, %s952, %s906
        $region56: #{tpu_custom_call.1} parent=27 // pred_fallthru
          _
      $region28: #{tpu_custom_call.1} parent=5 // pred_fallthru
        _
      %p955 = scmp.le.s32.totalorder 2, %s21
      // Predicated region
      $region57: #{tpu_custom_call.1} parent=5 // pred_check
        %p956 = pneg %p955
      $region58: #{tpu_custom_call.1} parent=5 // pred_check_branch
        %958 = sbr.rel (%p956) target = $region60
      $region59: #{tpu_custom_call.1} parent=5 // pred_region
        %s959 = ssub.s32 %s21, 2
        // Predicated region
        $region61: #{tpu_custom_call.1} parent=59 // pred_check
          %p960 = pneg %p111
        $region62: #{tpu_custom_call.1} parent=59 // pred_check_branch
          %962 = sbr.rel (%p960) target = $region64
        $region63: #{tpu_custom_call.1} parent=59 // pred_region
          %s963 = sand.u32 %s96, 1
          %s964 = scalar_lea.sflag [#allocation5], %s963
          %s965 = sand.u32 %s96, 1
          %s966 = smul.addr %s965, 128
          %s967 = scalar_lea.vmem [#allocation8], %s966
          %969 = dma.done %s964, 2048
        $region64: #{tpu_custom_call.1} parent=59 // pred_fallthru
          _
        // Predicated region
        $region65: #{tpu_custom_call.1} parent=59 // pred_check
          %p970 = pneg %p137
        $region66: #{tpu_custom_call.1} parent=59 // pred_check_branch
          %972 = sbr.rel (%p970) target = $region68
        $region67: #{tpu_custom_call.1} parent=59 // pred_region
          %s973 = sand.u32 %s27, 1
          %s974 = scalar_lea.sflag [#allocation10], %s973
          %s975 = sand.u32 %s122, 1
          %s976 = smul.addr %s975, 8
          %s977 = scalar_lea.vmem [#allocation9], %s976
          %979 = dma.done %s974, 128
        $region68: #{tpu_custom_call.1} parent=59 // pred_fallthru
          _
        // Predicated region
        $region69: #{tpu_custom_call.1} parent=59 // pred_check
          %p980 = pneg %p163
        $region70: #{tpu_custom_call.1} parent=59 // pred_check_branch
          %982 = sbr.rel (%p980) target = $region72
        $region71: #{tpu_custom_call.1} parent=59 // pred_region
          %s983 = sand.u32 %s27, 1
          %s984 = scalar_lea.sflag [#allocation10], %s983
          %s985 = sand.u32 %s148, 1
          %s986 = smul.addr %s985, 8
          %s987 = scalar_lea.vmem [#allocation11], %s986
          %989 = dma.done %s984, 128
        $region72: #{tpu_custom_call.1} parent=59 // pred_fallthru
          _
      $region60: #{tpu_custom_call.1} parent=5 // pred_fallthru
        _
    $region6: #{tpu_custom_call.1} parent=1 // loop_footer
      %s25 = sadd.s32 1, %s21
    $region7: #{tpu_custom_call.1} parent=1 // loop_footer_branch
      %20 = sbr.rel target = $region3
    $region8: #{tpu_custom_call.1} parent=1 // loop_exit
      _
    %990 = vsyncpa [#allocation4], 1
    %s991 = scalar_lea.sflag [#allocation4], 1
    %992 = vsyncpa %s991, 1
    %993 = vsyncpa [#allocation7], 1
    %994 = vsyncpa [#allocation5], 1
    %s995 = scalar_lea.sflag [#allocation5], 1
    %996 = vsyncpa %s995, 1
    %997 = vsyncpa [#allocation10], 1
    %s998 = scalar_lea.sflag [#allocation10], 1
    %999 = vsyncpa %s998, 1

</llo_original>
